<compile_context>
chip_gen: v7x
topology: tpu7x:2x2x1
jax: 0.10.0
libtpu: 0.0.40
codegen_flags: <defaults>
</compile_context>

<pallas_src>
import functools

import jax
import jax.numpy as jnp
from jax.experimental import pallas as pl
from jax.experimental.pallas import tpu as pltpu


def _critic_kernel(s_ref, a_ref, w1s_ref, w1a_ref, b1_ref, w2r_ref, b2_ref,
                   out_ref, *, compute_dtype):
    # In-kernel cast (no-op for f32) keeps HBM traffic at the input dtype while
    # giving the MXU native bf16 operands when requested.
    s = s_ref[...].astype(compute_dtype)                          # [TB, S]
    a = a_ref[...].astype(compute_dtype)                          # [TB, A]

    # fc1 as two MXU matmuls on the pre-split weight (no concat), f32 accum.
    h = jnp.dot(s, w1s_ref[...], preferred_element_type=jnp.float32)
    h = h + jnp.dot(a, w1a_ref[...], preferred_element_type=jnp.float32)
    h = jnp.maximum(h + b1_ref[...], 0.0)                         # [TB, H] f32

    # fc3 via transposed contraction: [1, H] x [TB, H] -> [1, TB].
    # Contraction on dim 1 of both operands avoids materializing h.T.
    q = jax.lax.dot_general(
        w2r_ref[...], h,
        dimension_numbers=(((1,), (1,)), ((), ())),
        preferred_element_type=jnp.float32)
    out_ref[...] = (q + b2_ref[...]).astype(out_ref.dtype)        # [1, TB]


def critic_net_forward(s, a, params, state_dim, action_dim, *,
                       block_b=2048, compute_dtype=jnp.float32):
    """Pallas forward pass. s, a may carry extra leading dims (reshaped away)."""
    assert block_b % 128 == 0, "batch tile must be a multiple of 128"
    s2 = s.reshape(-1, state_dim)          # no wrapper-side pad / cast passes
    a2 = a.reshape(-1, action_dim)
    B = s2.shape[0]
    H = params["w1"].shape[1]

    # Pre-split fc1 weight (state / action halves); fc3 weight as a row.
    # Weights are tiny: pre-casting them in the wrapper is negligible traffic.
    w1_s = params["w1"][:state_dim].astype(compute_dtype)          # [S, H]
    w1_a = params["w1"][state_dim:].astype(compute_dtype)          # [A, H]
    b1 = params["b1"].reshape(1, H).astype(jnp.float32)            # [1, H]
    w2_row = params["w2"].reshape(1, H).astype(jnp.float32)        # [1, H]
    b2 = params["b2"].reshape(1, 1).astype(jnp.float32)            # [1, 1]

    # Batch tile: multiple of 128 (lane-aligned output blocks).
    b_ceil = pl.cdiv(B, 128) * 128
    tb = min(block_b, b_ceil)
    # Ensure >= 2 grid steps when the batch allows it so v7x's two TensorCores
    # both get work (a second step is essentially free elsewhere).
    if pl.cdiv(B, tb) < 2 and b_ceil >= 256:
        tb = pl.cdiv(b_ceil // 2, 128) * 128
    num_tiles = pl.cdiv(B, tb)
    b_pad = num_tiles * tb          # only the (1, b_pad) output is padded

    kernel = functools.partial(_critic_kernel, compute_dtype=compute_dtype)

    out = pl.pallas_call(
        kernel,
        out_shape=jax.ShapeDtypeStruct((1, b_pad), jnp.float32),
        grid_spec=pltpu.PrefetchScalarGridSpec(
            num_scalar_prefetch=0,
            grid=(num_tiles,),
            in_specs=[
                pl.BlockSpec((tb, state_dim), lambda i: (i, 0)),    # s tile
                pl.BlockSpec((tb, action_dim), lambda i: (i, 0)),   # a tile
                pl.BlockSpec((state_dim, H), lambda i: (0, 0)),     # W1_s
                pl.BlockSpec((action_dim, H), lambda i: (0, 0)),    # W1_a
                pl.BlockSpec((1, H), lambda i: (0, 0)),             # b1
                pl.BlockSpec((1, H), lambda i: (0, 0)),             # w2 row
                pl.BlockSpec((1, 1), lambda i: (0, 0)),             # b2
            ],
            out_specs=pl.BlockSpec((1, tb), lambda i: (0, i)),      # lane-dense
        ),
        compiler_params=pltpu.CompilerParams(
            dimension_semantics=("parallel",),
        ),
    )(s2, a2, w1_s, w1_a, b1, w2_row, b2)

    # Tail lanes of the last block are undefined (partial input block) -> keep
    # this slice; every valid output lane depends only on its own batch row.
    return out.reshape(-1)[:B].reshape(B, 1)


def init_params(key, state_dim, action_dim, hidden_sizes=128):
    """Deterministic init mimicking nn.Linear's uniform(-1/sqrt(fan_in), ...)."""
    k1, k2, k3, k4 = jax.random.split(key, 4)
    in1 = state_dim + action_dim
    lim1 = 1.0 / jnp.sqrt(jnp.float32(in1))
    lim2 = 1.0 / jnp.sqrt(jnp.float32(hidden_sizes))
    # Weights stored [in, out] (transposed vs. PyTorch); biases kept 2-D.
    w1 = jax.random.uniform(k1, (in1, hidden_sizes), jnp.float32, -lim1, lim1)
    b1 = jax.random.uniform(k2, (1, hidden_sizes), jnp.float32, -lim1, lim1)
    w2 = jax.random.uniform(k3, (hidden_sizes, 1), jnp.float32, -lim2, lim2)
    b2 = jax.random.uniform(k4, (1, 1), jnp.float32, -lim2, lim2)
    return {"w1": w1, "b1": b1, "w2": w2, "b2": b2}


def _reference_forward(s, a, params, state_dim, action_dim):
    s2 = s.reshape(-1, state_dim)
    a2 = a.reshape(-1, action_dim)
    x = jnp.concatenate([s2, a2], axis=-1)
    h = jnp.maximum(x @ params["w1"] + params["b1"], 0.0)
    return h @ params["w2"] + params["b2"]


if __name__ == "__main__":
    state_dim, action_dim, hidden = 16, 8, 128   # module's default hidden size
    batch = 4

    key = jax.random.PRNGKey(0)
    kp, ks, ka = jax.random.split(key, 3)

    params = init_params(kp, state_dim, action_dim, hidden)
    # Inputs with an extra leading dim to exercise the reshape(-1, dim) glue.
    s = jax.random.normal(ks, (batch, 1, state_dim), jnp.float32)
    a = jax.random.normal(ka, (batch, 1, action_dim), jnp.float32)
    q_ref = _reference_forward(s, a, params, state_dim, action_dim)

    # f32 path, single batch tile (partial block: B=4 < 128).
    q = jax.block_until_ready(
        critic_net_forward(s, a, params, state_dim, action_dim))
    assert q.shape == (batch, 1), q.shape
    assert jnp.allclose(q, q_ref, atol=1e-4, rtol=1e-4), "mismatch (f32)"

    # Multi-tile path: B not divisible by the tile -> exercises the grid, the
    # un-padded partial last input block and the output tail slicing.
    batch2 = 300
    s_big = jax.random.normal(ks, (batch2, state_dim), jnp.float32)
    a_big = jax.random.normal(ka, (batch2, action_dim), jnp.float32)
    q_big = jax.block_until_ready(
        critic_net_forward(s_big, a_big, params, state_dim, action_dim,
                           block_b=128))
    q_big_ref = _reference_forward(s_big, a_big, params, state_dim, action_dim)
    assert q_big.shape == (batch2, 1), q_big.shape
    assert jnp.allclose(q_big, q_big_ref, atol=1e-4, rtol=1e-4), "mismatch (tiled)"

    # bf16 MXU-operand path (cast happens inside the kernel), f32 accumulation.
    q_bf16 = jax.block_until_ready(
        critic_net_forward(s, a, params, state_dim, action_dim,
                           compute_dtype=jnp.bfloat16))
    assert jnp.allclose(q_bf16, q_ref, atol=5e-2, rtol=5e-2), "mismatch (bf16)"

    print("KERNEL_OK")
</pallas_src>

<mosaic_0001>
module attributes {stable_mosaic.version = 11 : i64} {
  func.func @_critic_kernel(%arg0: i32, %arg1: memref<128x16xf32, #tpu.memory_space<vmem>>, %arg2: memref<128x8xf32, #tpu.memory_space<vmem>>, %arg3: memref<16x128xf32, #tpu.memory_space<vmem>>, %arg4: memref<8x128xf32, #tpu.memory_space<vmem>>, %arg5: memref<1x128xf32, #tpu.memory_space<vmem>>, %arg6: memref<1x128xf32, #tpu.memory_space<vmem>>, %arg7: memref<1x1xf32, #tpu.memory_space<vmem>>, %arg8: memref<1x128xf32, #tpu.memory_space<vmem>>) attributes {dimension_semantics = [#tpu.dimension_semantics<parallel>], iteration_bounds = array<i64: 1>, scalar_prefetch = 0 : i64, scratch_operands = 0 : i64, tpu.core_type = #tpu.core_type<tc>, window_params = [{transform_indices = @transform_0, window_bounds = array<i64: 128, 16>}, {transform_indices = @transform_1, window_bounds = array<i64: 128, 8>}, {pipeline_mode = #tpu.pipeline_mode<synchronous>, transform_indices = @transform_2, window_bounds = array<i64: 16, 128>}, {pipeline_mode = #tpu.pipeline_mode<synchronous>, transform_indices = @transform_3, window_bounds = array<i64: 8, 128>}, {pipeline_mode = #tpu.pipeline_mode<synchronous>, transform_indices = @transform_4, window_bounds = array<i64: 1, 128>}, {pipeline_mode = #tpu.pipeline_mode<synchronous>, transform_indices = @transform_5, window_bounds = array<i64: 1, 128>}, {pipeline_mode = #tpu.pipeline_mode<synchronous>, transform_indices = @transform_6, window_bounds = array<i64: 1, 1>}, {transform_indices = @transform_7, window_bounds = array<i64: 1, 128>}]} {
    %c0 = arith.constant 0 : index
    %c0_0 = arith.constant 0 : index
    %0 = vector.load %arg1[%c0, %c0_0] : memref<128x16xf32, #tpu.memory_space<vmem>>, vector<128x16xf32>
    %c0_1 = arith.constant 0 : index
    %c0_2 = arith.constant 0 : index
    %1 = vector.load %arg2[%c0_1, %c0_2] : memref<128x8xf32, #tpu.memory_space<vmem>>, vector<128x8xf32>
    %c0_3 = arith.constant 0 : index
    %c0_4 = arith.constant 0 : index
    %2 = vector.load %arg3[%c0_3, %c0_4] : memref<16x128xf32, #tpu.memory_space<vmem>>, vector<16x128xf32>
    %cst = arith.constant dense<0.000000e+00> : vector<128x128xf32>
    %3 = tpu.matmul %0, %2, %cst {dimension_numbers = #tpu.dot_dimension_numbers<[1], [0], [0], [1], [0, 0, 1, 1], [], []>} : vector<128x16xf32>, vector<16x128xf32>, vector<128x128xf32> -> vector<128x128xf32>
    %c0_5 = arith.constant 0 : index
    %c0_6 = arith.constant 0 : index
    %4 = vector.load %arg4[%c0_5, %c0_6] : memref<8x128xf32, #tpu.memory_space<vmem>>, vector<8x128xf32>
    %cst_7 = arith.constant dense<0.000000e+00> : vector<128x128xf32>
    %5 = tpu.matmul %1, %4, %cst_7 {dimension_numbers = #tpu.dot_dimension_numbers<[1], [0], [0], [1], [0, 0, 1, 1], [], []>} : vector<128x8xf32>, vector<8x128xf32>, vector<128x128xf32> -> vector<128x128xf32>
    %6 = arith.addf %3, %5 : vector<128x128xf32>
    %c0_8 = arith.constant 0 : index
    %c0_9 = arith.constant 0 : index
    %7 = vector.load %arg5[%c0_8, %c0_9] : memref<1x128xf32, #tpu.memory_space<vmem>>, vector<1x128xf32>
    %8 = vector.broadcast %7 : vector<1x128xf32> to vector<128x128xf32>
    %9 = arith.addf %6, %8 : vector<128x128xf32>
    %cst_10 = arith.constant 0.000000e+00 : f32
    %10 = vector.broadcast %cst_10 : f32 to vector<128x128xf32>
    %11 = arith.maximumf %9, %10 : vector<128x128xf32>
    %c0_11 = arith.constant 0 : index
    %c0_12 = arith.constant 0 : index
    %12 = vector.load %arg6[%c0_11, %c0_12] : memref<1x128xf32, #tpu.memory_space<vmem>>, vector<1x128xf32>
    %cst_13 = arith.constant dense<0.000000e+00> : vector<1x128xf32>
    %13 = tpu.matmul %12, %11, %cst_13 {dimension_numbers = #tpu.dot_dimension_numbers<[1], [1], [0], [0], [0, 0, 1, 0], [], []>} : vector<1x128xf32>, vector<128x128xf32>, vector<1x128xf32> -> vector<1x128xf32>
    %c0_14 = arith.constant 0 : index
    %c0_15 = arith.constant 0 : index
    %14 = vector.load %arg7[%c0_14, %c0_15] : memref<1x1xf32, #tpu.memory_space<vmem>>, vector<1x1xf32>
    %15 = vector.broadcast %14 : vector<1x1xf32> to vector<1x128xf32>
    %16 = arith.addf %13, %15 : vector<1x128xf32>
    %c0_16 = arith.constant 0 : index
    %c0_17 = arith.constant 0 : index
    %17 = vector.load %arg8[%c0_16, %c0_17] : memref<1x128xf32, #tpu.memory_space<vmem>>, vector<1x128xf32>
    tpu.vector_store %arg8[%c0_16, %c0_17], %16 {strides = array<i32>} : memref<1x128xf32, #tpu.memory_space<vmem>>, vector<1x128xf32>,
    return
  }
  func.func @transform_0(%arg0: i32) -> (i32, i32) {
    %c0_i32 = arith.constant 0 : i32
    %c0_i32_0 = arith.constant 0 : i32
    return %arg0, %c0_i32 : i32, i32
  }
  func.func @transform_1(%arg0: i32) -> (i32, i32) {
    %c0_i32 = arith.constant 0 : i32
    %c0_i32_0 = arith.constant 0 : i32
    return %arg0, %c0_i32 : i32, i32
  }
  func.func @transform_2(%arg0: i32) -> (i32, i32) {
    %c0_i32 = arith.constant 0 : i32
    %c0_i32_0 = arith.constant 0 : i32
    %c0_i32_1 = arith.constant 0 : i32
    return %c0_i32, %c0_i32_0 : i32, i32
  }
  func.func @transform_3(%arg0: i32) -> (i32, i32) {
    %c0_i32 = arith.constant 0 : i32
    %c0_i32_0 = arith.constant 0 : i32
    %c0_i32_1 = arith.constant 0 : i32
    return %c0_i32, %c0_i32_0 : i32, i32
  }
  func.func @transform_4(%arg0: i32) -> (i32, i32) {
    %c0_i32 = arith.constant 0 : i32
    %c0_i32_0 = arith.constant 0 : i32
    %c0_i32_1 = arith.constant 0 : i32
    return %c0_i32, %c0_i32_0 : i32, i32
  }
  func.func @transform_5(%arg0: i32) -> (i32, i32) {
    %c0_i32 = arith.constant 0 : i32
    %c0_i32_0 = arith.constant 0 : i32
    %c0_i32_1 = arith.constant 0 : i32
    return %c0_i32, %c0_i32_0 : i32, i32
  }
  func.func @transform_6(%arg0: i32) -> (i32, i32) {
    %c0_i32 = arith.constant 0 : i32
    %c0_i32_0 = arith.constant 0 : i32
    %c0_i32_1 = arith.constant 0 : i32
    return %c0_i32, %c0_i32_0 : i32, i32
  }
  func.func @transform_7(%arg0: i32) -> (i32, i32) {
    %c0_i32 = arith.constant 0 : i32
    %c0_i32_0 = arith.constant 0 : i32
    return %c0_i32, %arg0 : i32, i32
  }
}

</mosaic_0001>

<llo_original>
// kernel: tpu_custom_call.1
$region0: #{tpu_custom_call.1}
  #allocation0 [shape = 'u32[]', space=smem, size = 0x4, offset = 0x4, fixed_abs, tag = 'smem constant byte address 0x4 - core index']
  #allocation1 [shape = 'u32[144,128]{1,0:T(1,128)}', space=vmem, size = 0x12000, scoped, tag = 'internal scratch']
  #allocation2 [shape = 'f32[1,1]{1,0:T(1,128)S(1)}', space=vmem, size = 0x200, scoped, tag = 'scoped memory for tpu_custom_call.1']
  %s0 = inlined_call_operand.hbm [shape: f32[4,16], index: 0, kind: input, shape index: {}]
  %s1 = inlined_call_operand.vmem [shape: f32[4,8], index: 1, kind: input, shape index: {}]
  %s2 = inlined_call_operand.hbm [shape: f32[16,128], index: 2, kind: input, shape index: {}]
  %s3 = inlined_call_operand.vmem [shape: f32[8,128], index: 3, kind: input, shape index: {}]
  %s4 = inlined_call_operand.vmem [shape: f32[1,128], index: 4, kind: input, shape index: {}]
  %s5 = inlined_call_operand.vmem [shape: f32[1,128], index: 5, kind: input, shape index: {}]
  %s6 = inlined_call_operand.<no memory space> [shape: f32[1,1], index: 6, kind: input, shape index: {}]
  %s7 = inlined_call_operand.hbm [shape: f32[1,128], index: 7, kind: output, shape index: {}]
  %s8 = sld [smem:[#allocation0]]
  $region46: #{tpu_custom_call.1} parent=0
    _
  %s10 = ssub.s32 1, %s8
  %s11 = scalar_select 0, %s10, %s8
  %v12 = vstv %s6
  %13 = vst [vmem:[#allocation2] sm:$0x1] %v12
  $region1: #{tpu_custom_call.1} parent=0
    #allocation3 [shape = 'u8[65536]{0}', space=vmem, size = 0x10000, scoped, tag = 'input window, operand 0, single buffered']
    #allocation4 [shape = 's32[1]{0}', space=sflag, size = 0x4, scoped, tag = 'scoped memory for tpu_custom_call.1']
    #allocation5 [shape = 's32[1]{0}', space=sflag, size = 0x4, scoped, tag = 'scoped memory for tpu_custom_call.1']
    #allocation6 [shape = 'u8[8192]{0}', space=vmem, size = 0x2000, scoped, tag = 'input window, operand 2, single buffered']
    #allocation7 [shape = 's32[1]{0}', space=sflag, size = 0x4, scoped, tag = 'scoped memory for tpu_custom_call.1']
    #allocation8 [shape = 'u8[512]{0}', space=vmem, size = 0x400, scoped, tag = 'output window, operand 0, single buffered']
    %14 = vsyncpa [#allocation4], 0
    %15 = vsyncpa [#allocation7], 0
    %16 = vsyncpa [#allocation5], 0
    // Predicated region
    $region2: #{tpu_custom_call.1} parent=1 // pred_check
      _
    $region3: #{tpu_custom_call.1} parent=1 // pred_check_branch
      %18 = sbr.rel (0) target = $region5
    $region4: #{tpu_custom_call.1} parent=1 // pred_region
      %s20 = ssub.s32 2048, 64
      %21 = vsyncadd [#allocation4], %s20
      %s22 = sshll.u32 [#allocation3], 4
      %s23 = int_to_ptr.vmem [resolvable:$true] %s22
      %28 = dma.hbm_to_vmem [thread:$0]  %s0, 64, %s23, [#allocation4], 64, 64, 4
    $region5: #{tpu_custom_call.1} parent=1 // pred_fallthru
      _
    // Predicated region
    $region6: #{tpu_custom_call.1} parent=1 // pred_check
      _
    $region7: #{tpu_custom_call.1} parent=1 // pred_check_branch
      %30 = sbr.rel (0) target = $region9
    $region8: #{tpu_custom_call.1} parent=1 // pred_region
      _
    $region9: #{tpu_custom_call.1} parent=1 // pred_fallthru
      _
    // Predicated region
    $region10: #{tpu_custom_call.1} parent=1 // pred_check
      _
    $region11: #{tpu_custom_call.1} parent=1 // pred_check_branch
      %32 = sbr.rel (0) target = $region13
    $region12: #{tpu_custom_call.1} parent=1 // pred_region
      %s34 = ssub.s32 256, 256
      %35 = vsyncadd [#allocation7], %s34
      %s36 = sshll.u32 [#allocation6], 4
      %s37 = int_to_ptr.vmem [resolvable:$true] %s36
      %42 = dma.hbm_to_vmem [thread:$0]  %s2, 256, %s37, [#allocation7], 128, 128, 8
    $region13: #{tpu_custom_call.1} parent=1 // pred_fallthru
      _
    // Predicated region
    $region14: #{tpu_custom_call.1} parent=1 // pred_check
      _
    $region15: #{tpu_custom_call.1} parent=1 // pred_check_branch
      %44 = sbr.rel (0) target = $region17
    $region16: #{tpu_custom_call.1} parent=1 // pred_region
      _
    $region17: #{tpu_custom_call.1} parent=1 // pred_fallthru
      _
    // Predicated region
    $region18: #{tpu_custom_call.1} parent=1 // pred_check
      _
    $region19: #{tpu_custom_call.1} parent=1 // pred_check_branch
      %46 = sbr.rel (0) target = $region21
    $region20: #{tpu_custom_call.1} parent=1 // pred_region
      _
    $region21: #{tpu_custom_call.1} parent=1 // pred_fallthru
      _
    // Predicated region
    $region22: #{tpu_custom_call.1} parent=1 // pred_check
      _
    $region23: #{tpu_custom_call.1} parent=1 // pred_check_branch
      %48 = sbr.rel (0) target = $region25
    $region24: #{tpu_custom_call.1} parent=1 // pred_region
      _
    $region25: #{tpu_custom_call.1} parent=1 // pred_fallthru
      _
    // Predicated region
    $region26: #{tpu_custom_call.1} parent=1 // pred_check
      _
    $region27: #{tpu_custom_call.1} parent=1 // pred_check_branch
      %50 = sbr.rel (0) target = $region29
    $region28: #{tpu_custom_call.1} parent=1 // pred_region
      _
    $region29: #{tpu_custom_call.1} parent=1 // pred_fallthru
      _
    // Predicated region
    $region30: #{tpu_custom_call.1} parent=1 // pred_check
      _
    $region31: #{tpu_custom_call.1} parent=1 // pred_check_branch
      %52 = sbr.rel (0) target = $region33
    $region32: #{tpu_custom_call.1} parent=1 // pred_region
      %53 = dma.done [#allocation4], 2048
    $region33: #{tpu_custom_call.1} parent=1 // pred_fallthru
      _
    // Predicated region
    $region34: #{tpu_custom_call.1} parent=1 // pred_check
      _
    $region35: #{tpu_custom_call.1} parent=1 // pred_check_branch
      %55 = sbr.rel (0) target = $region37
    $region36: #{tpu_custom_call.1} parent=1 // pred_region
      %56 = dma.done [#allocation7], 256
    $region37: #{tpu_custom_call.1} parent=1 // pred_fallthru
      _
    %v57 = vld [vmem:[#allocation3] sm:$0xff]
    %v58 = vld [vmem:[#allocation3 + $0x8] sm:$0xff]
    %v59 = vld [vmem:[#allocation3 + $0x10] sm:$0xff]
    %v60 = vld [vmem:[#allocation3 + $0x18] sm:$0xff]
    %v61 = vld [vmem:[#allocation3 + $0x20] sm:$0xff]
    %v62 = vld [vmem:[#allocation3 + $0x28] sm:$0xff]
    %v63 = vld [vmem:[#allocation3 + $0x30] sm:$0xff]
    %v64 = vld [vmem:[#allocation3 + $0x38] sm:$0xff]
    %v65 = vld [vmem:[#allocation3 + $0x40] sm:$0xff]
    %v66 = vld [vmem:[#allocation3 + $0x48] sm:$0xff]
    %v67 = vld [vmem:[#allocation3 + $0x50] sm:$0xff]
    %v68 = vld [vmem:[#allocation3 + $0x58] sm:$0xff]
    %v69 = vld [vmem:[#allocation3 + $0x60] sm:$0xff]
    %v70 = vld [vmem:[#allocation3 + $0x68] sm:$0xff]
    %v71 = vld [vmem:[#allocation3 + $0x70] sm:$0xff]
    %v72 = vld [vmem:[#allocation3 + $0x78] sm:$0xff]
    %v73 = vld [vmem:[%s1] sm:$0xff]
    %v74 = vld [vmem:[%s1 + $0x8] sm:$0xff]
    %v75 = vld [vmem:[%s1 + $0x10] sm:$0xff]
    %v76 = vld [vmem:[%s1 + $0x18] sm:$0xff]
    %v77 = vld [vmem:[%s1 + $0x20] sm:$0xff]
    %v78 = vld [vmem:[%s1 + $0x28] sm:$0xff]
    %v79 = vld [vmem:[%s1 + $0x30] sm:$0xff]
    %v80 = vld [vmem:[%s1 + $0x38] sm:$0xff]
    %v81 = vld [vmem:[%s1 + $0x40] sm:$0xff]
    %v82 = vld [vmem:[%s1 + $0x48] sm:$0xff]
    %v83 = vld [vmem:[%s1 + $0x50] sm:$0xff]
    %v84 = vld [vmem:[%s1 + $0x58] sm:$0xff]
    %v85 = vld [vmem:[%s1 + $0x60] sm:$0xff]
    %v86 = vld [vmem:[%s1 + $0x68] sm:$0xff]
    %v87 = vld [vmem:[%s1 + $0x70] sm:$0xff]
    %v88 = vld [vmem:[%s1 + $0x78] sm:$0xff]
    %v89 = vld [vmem:[#allocation6] sm:$0xff]
    %v90 = vld [vmem:[#allocation6 + $0x8] sm:$0xff]
    %v91 = vld [vmem:[%s3] sm:$0xff]
    %vm92 = vcmask 64512
    %v94 = vsel %vm92, %v73, 0
    %v97 = vsel %vm92, %v74, 0
    %v100 = vsel %vm92, %v75, 0
    %v103 = vsel %vm92, %v76, 0
    %v106 = vsel %vm92, %v77, 0
    %v109 = vsel %vm92, %v78, 0
    %v112 = vsel %vm92, %v79, 0
    %v115 = vsel %vm92, %v80, 0
    %v118 = vsel %vm92, %v81, 0
    %v121 = vsel %vm92, %v82, 0
    %v124 = vsel %vm92, %v83, 0
    %v127 = vsel %vm92, %v84, 0
    %v130 = vsel %vm92, %v85, 0
    %v133 = vsel %vm92, %v86, 0
    %v136 = vsel %vm92, %v87, 0
    %v139 = vsel %vm92, %v88, 0
    %141 = vmatprep.subr.mxu0 0.0
    %142 = vmatpush1.msra.mxu0 %v91
    %143 = vmatprep.subr.mxu0 0.0
    %144 = vmatpush1.msra.mxu0 0.0
    %145 = vmatprep.subr.mxu0 0.0
    %146 = vmatpush1.msra.mxu0 0.0
    %147 = vmatprep.subr.mxu0 0.0
    %148 = vmatpush1.msra.mxu0 0.0
    %149 = vmatprep.subr.mxu0 0.0
    %150 = vmatpush1.msra.mxu0 0.0
    %151 = vmatprep.subr.mxu0 0.0
    %152 = vmatpush1.msra.mxu0 0.0
    %153 = vmatprep.subr.mxu0 0.0
    %154 = vmatpush1.msra.mxu0 0.0
    %155 = vmatprep.subr.mxu0 0.0
    %156 = vmatpush1.msra.mxu0 0.0
    %157 = vmatprep.subr.mxu0 0.0
    %158 = vmatpush1.msra.mxu0 0.0
    %159 = vmatprep.subr.mxu0 0.0
    %160 = vmatpush1.msra.mxu0 0.0
    %161 = vmatprep.subr.mxu0 0.0
    %162 = vmatpush1.msra.mxu0 0.0
    %163 = vmatprep.subr.mxu0 0.0
    %164 = vmatpush1.msra.mxu0 0.0
    %165 = vmatprep.subr.mxu0 0.0
    %166 = vmatpush1.msra.mxu0 0.0
    %167 = vmatprep.subr.mxu0 0.0
    %168 = vmatpush1.msra.mxu0 0.0
    %169 = vmatprep.subr.mxu0 0.0
    %170 = vmatpush1.msra.mxu0 0.0
    %171 = vmatprep.subr.mxu0 0.0
    %172 = vmatpush1.msra.mxu0 0.0
    %173 = vmatprep.subr.mxu0 0.0
    %174 = vmatpush1.msra.mxu0 0.0
    %175 = vmatprep.subr.mxu0 0.0
    %176 = vmatpush1.msra.mxu0 0.0
    %177 = vmatprep.subr.mxu0 0.0
    %178 = vmatpush1.msra.mxu0 0.0
    %179 = vmatprep.subr.mxu0 0.0
    %180 = vmatpush1.msra.mxu0 0.0
    %181 = vmatprep.subr.mxu0 0.0
    %182 = vmatpush1.msra.mxu0 0.0
    %183 = vmatprep.subr.mxu0 0.0
    %184 = vmatpush1.msra.mxu0 0.0
    %185 = vmatprep.subr.mxu0 0.0
    %186 = vmatpush1.msra.mxu0 0.0
    %187 = vmatprep.subr.mxu0 0.0
    %188 = vmatpush1.msra.mxu0 0.0
    %189 = vmatprep.subr.mxu0 0.0
    %190 = vmatpush1.msra.mxu0 0.0
    %191 = vmatprep.subr.mxu0 0.0
    %192 = vmatpush1.msra.mxu0 0.0
    %193 = vmatprep.subr.mxu0 0.0
    %194 = vmatpush1.msra.mxu0 0.0
    %195 = vmatprep.subr.mxu0 0.0
    %196 = vmatpush1.msra.mxu0 0.0
    %197 = vmatprep.subr.mxu0 0.0
    %198 = vmatpush1.msra.mxu0 0.0
    %199 = vmatprep.subr.mxu0 0.0
    %200 = vmatpush1.msra.mxu0 0.0
    %201 = vmatprep.subr.mxu0 0.0
    %202 = vmatpush1.msra.mxu0 0.0
    %203 = vmatprep.subr.mxu0 0.0
    %204 = vmatpush1.msra.mxu0 0.0
    %205 = vmatprep.mubr.f32.mxu0 0.0
    %206 = vmatmul.mubr.f32.gmra.mrb[0].mxu0 %v94
    %v207 = vpop.f32.mrb[0].mxu0
    %v208 = vadd.f32 0.0, %v207
    %v209 = vpop.f32.mrb[0].mxu0
    %210 = vmatprep.mubr.f32.mxu0 0.0
    %211 = vmatmul.mubr.f32.gmra.mrb[0].mxu0 %v97
    %v212 = vpop.f32.mrb[0].mxu0
    %v213 = vadd.f32 0.0, %v212
    %v214 = vpop.f32.mrb[0].mxu0
    %215 = vmatprep.mubr.f32.mxu0 0.0
    %216 = vmatmul.mubr.f32.gmra.mrb[0].mxu0 %v100
    %v217 = vpop.f32.mrb[0].mxu0
    %v218 = vadd.f32 0.0, %v217
    %v219 = vpop.f32.mrb[0].mxu0
    %220 = vmatprep.mubr.f32.mxu0 0.0
    %221 = vmatmul.mubr.f32.gmra.mrb[0].mxu0 %v103
    %v222 = vpop.f32.mrb[0].mxu0
    %v223 = vadd.f32 0.0, %v222
    %v224 = vpop.f32.mrb[0].mxu0
    %225 = vmatprep.mubr.f32.mxu0 0.0
    %226 = vmatmul.mubr.f32.gmra.mrb[0].mxu0 %v106
    %v227 = vpop.f32.mrb[0].mxu0
    %v228 = vadd.f32 0.0, %v227
    %v229 = vpop.f32.mrb[0].mxu0
    %230 = vmatprep.mubr.f32.mxu0 0.0
    %231 = vmatmul.mubr.f32.gmra.mrb[0].mxu0 %v109
    %v232 = vpop.f32.mrb[0].mxu0
    %v233 = vadd.f32 0.0, %v232
    %v234 = vpop.f32.mrb[0].mxu0
    %235 = vmatprep.mubr.f32.mxu0 0.0
    %236 = vmatmul.mubr.f32.gmra.mrb[0].mxu0 %v112
    %v237 = vpop.f32.mrb[0].mxu0
    %v238 = vadd.f32 0.0, %v237
    %v239 = vpop.f32.mrb[0].mxu0
    %240 = vmatprep.mubr.f32.mxu0 0.0
    %241 = vmatmul.mubr.f32.gmra.mrb[0].mxu0 %v115
    %v242 = vpop.f32.mrb[0].mxu0
    %v243 = vadd.f32 0.0, %v242
    %v244 = vpop.f32.mrb[0].mxu0
    %245 = vmatprep.mubr.f32.mxu0 0.0
    %246 = vmatmul.mubr.f32.gmra.mrb[0].mxu0 %v118
    %v247 = vpop.f32.mrb[0].mxu0
    %v248 = vadd.f32 0.0, %v247
    %v249 = vpop.f32.mrb[0].mxu0
    %250 = vmatprep.mubr.f32.mxu0 0.0
    %251 = vmatmul.mubr.f32.gmra.mrb[0].mxu0 %v121
    %v252 = vpop.f32.mrb[0].mxu0
    %v253 = vadd.f32 0.0, %v252
    %v254 = vpop.f32.mrb[0].mxu0
    %255 = vmatprep.mubr.f32.mxu0 0.0
    %256 = vmatmul.mubr.f32.gmra.mrb[0].mxu0 %v124
    %v257 = vpop.f32.mrb[0].mxu0
    %v258 = vadd.f32 0.0, %v257
    %v259 = vpop.f32.mrb[0].mxu0
    %260 = vmatprep.mubr.f32.mxu0 0.0
    %261 = vmatmul.mubr.f32.gmra.mrb[0].mxu0 %v127
    %v262 = vpop.f32.mrb[0].mxu0
    %v263 = vadd.f32 0.0, %v262
    %v264 = vpop.f32.mrb[0].mxu0
    %265 = vmatprep.mubr.f32.mxu0 0.0
    %266 = vmatmul.mubr.f32.gmra.mrb[0].mxu0 %v130
    %v267 = vpop.f32.mrb[0].mxu0
    %v268 = vadd.f32 0.0, %v267
    %v269 = vpop.f32.mrb[0].mxu0
    %270 = vmatprep.mubr.f32.mxu0 0.0
    %271 = vmatmul.mubr.f32.gmra.mrb[0].mxu0 %v133
    %v272 = vpop.f32.mrb[0].mxu0
    %v273 = vadd.f32 0.0, %v272
    %v274 = vpop.f32.mrb[0].mxu0
    %275 = vmatprep.mubr.f32.mxu0 0.0
    %276 = vmatmul.mubr.f32.gmra.mrb[0].mxu0 %v136
    %v277 = vpop.f32.mrb[0].mxu0
    %v278 = vadd.f32 0.0, %v277
    %v279 = vpop.f32.mrb[0].mxu0
    %280 = vmatprep.mubr.f32.mxu0 0.0
    %281 = vmatmul.mubr.f32.gmra.mrb[0].mxu0 %v139
    %v282 = vpop.f32.mrb[0].mxu0
    %v283 = vadd.f32 0.0, %v282
    %v284 = vpop.f32.mrb[0].mxu0
    %285 = vdwg.mxu0
    %vm286 = vcmask 130048
    %v288 = vsel %vm286, %v57, 0
    %v291 = vsel %vm286, %v58, 0
    %v294 = vsel %vm286, %v59, 0
    %v297 = vsel %vm286, %v60, 0
    %v300 = vsel %vm286, %v61, 0
    %v303 = vsel %vm286, %v62, 0
    %v306 = vsel %vm286, %v63, 0
    %v309 = vsel %vm286, %v64, 0
    %v312 = vsel %vm286, %v65, 0
    %v315 = vsel %vm286, %v66, 0
    %v318 = vsel %vm286, %v67, 0
    %v321 = vsel %vm286, %v68, 0
    %v324 = vsel %vm286, %v69, 0
    %v327 = vsel %vm286, %v70, 0
    %v330 = vsel %vm286, %v71, 0
    %v333 = vsel %vm286, %v72, 0
    %335 = vmatprep.subr.mxu0 0.0
    %336 = vmatpush1.msra.mxu0 %v89
    %337 = vmatprep.subr.mxu0 0.0
    %338 = vmatpush1.msra.mxu0 %v90
    %339 = vmatprep.subr.mxu0 0.0
    %340 = vmatpush1.msra.mxu0 0.0
    %341 = vmatprep.subr.mxu0 0.0
    %342 = vmatpush1.msra.mxu0 0.0
    %343 = vmatprep.subr.mxu0 0.0
    %344 = vmatpush1.msra.mxu0 0.0
    %345 = vmatprep.subr.mxu0 0.0
    %346 = vmatpush1.msra.mxu0 0.0
    %347 = vmatprep.subr.mxu0 0.0
    %348 = vmatpush1.msra.mxu0 0.0
    %349 = vmatprep.subr.mxu0 0.0
    %350 = vmatpush1.msra.mxu0 0.0
    %351 = vmatprep.subr.mxu0 0.0
    %352 = vmatpush1.msra.mxu0 0.0
    %353 = vmatprep.subr.mxu0 0.0
    %354 = vmatpush1.msra.mxu0 0.0
    %355 = vmatprep.subr.mxu0 0.0
    %356 = vmatpush1.msra.mxu0 0.0
    %357 = vmatprep.subr.mxu0 0.0
    %358 = vmatpush1.msra.mxu0 0.0
    %359 = vmatprep.subr.mxu0 0.0
    %360 = vmatpush1.msra.mxu0 0.0
    %361 = vmatprep.subr.mxu0 0.0
    %362 = vmatpush1.msra.mxu0 0.0
    %363 = vmatprep.subr.mxu0 0.0
    %364 = vmatpush1.msra.mxu0 0.0
    %365 = vmatprep.subr.mxu0 0.0
    %366 = vmatpush1.msra.mxu0 0.0
    %367 = vmatprep.subr.mxu0 0.0
    %368 = vmatpush1.msra.mxu0 0.0
    %369 = vmatprep.subr.mxu0 0.0
    %370 = vmatpush1.msra.mxu0 0.0
    %371 = vmatprep.subr.mxu0 0.0
    %372 = vmatpush1.msra.mxu0 0.0
    %373 = vmatprep.subr.mxu0 0.0
    %374 = vmatpush1.msra.mxu0 0.0
    %375 = vmatprep.subr.mxu0 0.0
    %376 = vmatpush1.msra.mxu0 0.0
    %377 = vmatprep.subr.mxu0 0.0
    %378 = vmatpush1.msra.mxu0 0.0
    %379 = vmatprep.subr.mxu0 0.0
    %380 = vmatpush1.msra.mxu0 0.0
    %381 = vmatprep.subr.mxu0 0.0
    %382 = vmatpush1.msra.mxu0 0.0
    %383 = vmatprep.subr.mxu0 0.0
    %384 = vmatpush1.msra.mxu0 0.0
    %385 = vmatprep.subr.mxu0 0.0
    %386 = vmatpush1.msra.mxu0 0.0
    %387 = vmatprep.subr.mxu0 0.0
    %388 = vmatpush1.msra.mxu0 0.0
    %389 = vmatprep.subr.mxu0 0.0
    %390 = vmatpush1.msra.mxu0 0.0
    %391 = vmatprep.subr.mxu0 0.0
    %392 = vmatpush1.msra.mxu0 0.0
    %393 = vmatprep.subr.mxu0 0.0
    %394 = vmatpush1.msra.mxu0 0.0
    %395 = vmatprep.subr.mxu0 0.0
    %396 = vmatpush1.msra.mxu0 0.0
    %397 = vmatprep.subr.mxu0 0.0
    %398 = vmatpush1.msra.mxu0 0.0
    %399 = vmatprep.mubr.f32.mxu0 0.0
    %400 = vmatmul.mubr.f32.gmra.mrb[0].mxu0 %v288
    %v401 = vpop.f32.mrb[0].mxu0
    %v402 = vadd.f32 %v208, %v401
    %v403 = vpop.f32.mrb[0].mxu0
    %404 = vmatprep.mubr.f32.mxu0 0.0
    %405 = vmatmul.mubr.f32.gmra.mrb[0].mxu0 %v291
    %v406 = vpop.f32.mrb[0].mxu0
    %v407 = vadd.f32 %v213, %v406
    %v408 = vpop.f32.mrb[0].mxu0
    %409 = vmatprep.mubr.f32.mxu0 0.0
    %410 = vmatmul.mubr.f32.gmra.mrb[0].mxu0 %v294
    %v411 = vpop.f32.mrb[0].mxu0
    %v412 = vadd.f32 %v218, %v411
    %v413 = vpop.f32.mrb[0].mxu0
    %414 = vmatprep.mubr.f32.mxu0 0.0
    %415 = vmatmul.mubr.f32.gmra.mrb[0].mxu0 %v297
    %v416 = vpop.f32.mrb[0].mxu0
    %v417 = vadd.f32 %v223, %v416
    %v418 = vpop.f32.mrb[0].mxu0
    %419 = vmatprep.mubr.f32.mxu0 0.0
    %420 = vmatmul.mubr.f32.gmra.mrb[0].mxu0 %v300
    %v421 = vpop.f32.mrb[0].mxu0
    %v422 = vadd.f32 %v228, %v421
    %v423 = vpop.f32.mrb[0].mxu0
    %424 = vmatprep.mubr.f32.mxu0 0.0
    %425 = vmatmul.mubr.f32.gmra.mrb[0].mxu0 %v303
    %v426 = vpop.f32.mrb[0].mxu0
    %v427 = vadd.f32 %v233, %v426
    %v428 = vpop.f32.mrb[0].mxu0
    %429 = vmatprep.mubr.f32.mxu0 0.0
    %430 = vmatmul.mubr.f32.gmra.mrb[0].mxu0 %v306
    %v431 = vpop.f32.mrb[0].mxu0
    %v432 = vadd.f32 %v238, %v431
    %v433 = vpop.f32.mrb[0].mxu0
    %434 = vmatprep.mubr.f32.mxu0 0.0
    %435 = vmatmul.mubr.f32.gmra.mrb[0].mxu0 %v309
    %v436 = vpop.f32.mrb[0].mxu0
    %v437 = vadd.f32 %v243, %v436
    %v438 = vpop.f32.mrb[0].mxu0
    %439 = vmatprep.mubr.f32.mxu0 0.0
    %440 = vmatmul.mubr.f32.gmra.mrb[0].mxu0 %v312
    %v441 = vpop.f32.mrb[0].mxu0
    %v442 = vadd.f32 %v248, %v441
    %v443 = vpop.f32.mrb[0].mxu0
    %444 = vmatprep.mubr.f32.mxu0 0.0
    %445 = vmatmul.mubr.f32.gmra.mrb[0].mxu0 %v315
    %v446 = vpop.f32.mrb[0].mxu0
    %v447 = vadd.f32 %v253, %v446
    %v448 = vpop.f32.mrb[0].mxu0
    %449 = vmatprep.mubr.f32.mxu0 0.0
    %450 = vmatmul.mubr.f32.gmra.mrb[0].mxu0 %v318
    %v451 = vpop.f32.mrb[0].mxu0
    %v452 = vadd.f32 %v258, %v451
    %v453 = vpop.f32.mrb[0].mxu0
    %454 = vmatprep.mubr.f32.mxu0 0.0
    %455 = vmatmul.mubr.f32.gmra.mrb[0].mxu0 %v321
    %v456 = vpop.f32.mrb[0].mxu0
    %v457 = vadd.f32 %v263, %v456
    %v458 = vpop.f32.mrb[0].mxu0
    %459 = vmatprep.mubr.f32.mxu0 0.0
    %460 = vmatmul.mubr.f32.gmra.mrb[0].mxu0 %v324
    %v461 = vpop.f32.mrb[0].mxu0
    %v462 = vadd.f32 %v268, %v461
    %v463 = vpop.f32.mrb[0].mxu0
    %464 = vmatprep.mubr.f32.mxu0 0.0
    %465 = vmatmul.mubr.f32.gmra.mrb[0].mxu0 %v327
    %v466 = vpop.f32.mrb[0].mxu0
    %v467 = vadd.f32 %v273, %v466
    %v468 = vpop.f32.mrb[0].mxu0
    %469 = vmatprep.mubr.f32.mxu0 0.0
    %470 = vmatmul.mubr.f32.gmra.mrb[0].mxu0 %v330
    %v471 = vpop.f32.mrb[0].mxu0
    %v472 = vadd.f32 %v278, %v471
    %v473 = vpop.f32.mrb[0].mxu0
    %474 = vmatprep.mubr.f32.mxu0 0.0
    %475 = vmatmul.mubr.f32.gmra.mrb[0].mxu0 %v333
    %v476 = vpop.f32.mrb[0].mxu0
    %v477 = vadd.f32 %v283, %v476
    %v478 = vpop.f32.mrb[0].mxu0
    %479 = vdwg.mxu0
    %v480 = vld [vmem:[%s4] sm:$0x1]
    %v482 = vlaneseq
    %v483 = vshrl.u32 %v482, 7
    %v484 = vsub.s32 0, %v483
    %v485 = vrot.slane %v480, %v484
    %v487 = vadd.f32 %v402, %v485
    %v488 = vadd.f32 %v407, %v485
    %v489 = vadd.f32 %v412, %v485
    %v490 = vadd.f32 %v417, %v485
    %v491 = vadd.f32 %v422, %v485
    %v492 = vadd.f32 %v427, %v485
    %v493 = vadd.f32 %v432, %v485
    %v494 = vadd.f32 %v437, %v485
    %v495 = vadd.f32 %v442, %v485
    %v496 = vadd.f32 %v447, %v485
    %v497 = vadd.f32 %v452, %v485
    %v498 = vadd.f32 %v457, %v485
    %v499 = vadd.f32 %v462, %v485
    %v500 = vadd.f32 %v467, %v485
    %v501 = vadd.f32 %v472, %v485
    %v502 = vadd.f32 %v477, %v485
    %v503 = vmax.f32 %v487, 0.0
    %v504 = vmax.f32 %v488, 0.0
    %v505 = vmax.f32 %v489, 0.0
    %v506 = vmax.f32 %v490, 0.0
    %v507 = vmax.f32 %v491, 0.0
    %v508 = vmax.f32 %v492, 0.0
    %v509 = vmax.f32 %v493, 0.0
    %v510 = vmax.f32 %v494, 0.0
    %v511 = vmax.f32 %v495, 0.0
    %v512 = vmax.f32 %v496, 0.0
    %v513 = vmax.f32 %v497, 0.0
    %v514 = vmax.f32 %v498, 0.0
    %v515 = vmax.f32 %v499, 0.0
    %v516 = vmax.f32 %v500, 0.0
    %v517 = vmax.f32 %v501, 0.0
    %v518 = vmax.f32 %v502, 0.0
    %v519 = vld [vmem:[%s5] sm:$0x1]
    %v520 = vld [vmem:[#allocation2] sm:$0x1]
    %522 = vset.pattern.permute.xlu0 0
    %523 = vperm.xlu0 %522, %v520
    %v524 = vpop.permute.xlu0 %523
    %v526 = vlaneseq
    %v527 = vshrl.u32 %v526, 7
    %v528 = vsub.s32 0, %v527
    %v529 = vrot.slane %v524, %v528
    %530 = vmatprep.subr.mxu0 0.0
    %531 = vmatpush1.xpose.msra.mxu0 %v503
    %532 = vmatprep.subr.mxu0 0.0
    %533 = vmatpush1.xpose.msra.mxu0 %v504
    %534 = vmatprep.subr.mxu0 0.0
    %535 = vmatpush1.xpose.msra.mxu0 %v505
    %536 = vmatprep.subr.mxu0 0.0
    %537 = vmatpush1.xpose.msra.mxu0 %v506
    %538 = vmatprep.subr.mxu0 0.0
    %539 = vmatpush1.xpose.msra.mxu0 %v507
    %540 = vmatprep.subr.mxu0 0.0
    %541 = vmatpush1.xpose.msra.mxu0 %v508
    %542 = vmatprep.subr.mxu0 0.0
    %543 = vmatpush1.xpose.msra.mxu0 %v509
    %544 = vmatprep.subr.mxu0 0.0
    %545 = vmatpush1.xpose.msra.mxu0 %v510
    %546 = vmatprep.subr.mxu0 0.0
    %547 = vmatpush1.xpose.msra.mxu0 %v511
    %548 = vmatprep.subr.mxu0 0.0
    %549 = vmatpush1.xpose.msra.mxu0 %v512
    %550 = vmatprep.subr.mxu0 0.0
    %551 = vmatpush1.xpose.msra.mxu0 %v513
    %552 = vmatprep.subr.mxu0 0.0
    %553 = vmatpush1.xpose.msra.mxu0 %v514
    %554 = vmatprep.subr.mxu0 0.0
    %555 = vmatpush1.xpose.msra.mxu0 %v515
    %556 = vmatprep.subr.mxu0 0.0
    %557 = vmatpush1.xpose.msra.mxu0 %v516
    %558 = vmatprep.subr.mxu0 0.0
    %559 = vmatpush1.xpose.msra.mxu0 %v517
    %560 = vmatprep.subr.mxu0 0.0
    %561 = vmatpush1.xpose.msra.mxu0 %v518
    %562 = vmatprep.subr.mxu0 0.0
    %563 = vmatpush1.xpose.msra.mxu0 0.0
    %564 = vmatprep.subr.mxu0 0.0
    %565 = vmatpush1.xpose.msra.mxu0 0.0
    %566 = vmatprep.subr.mxu0 0.0
    %567 = vmatpush1.xpose.msra.mxu0 0.0
    %568 = vmatprep.subr.mxu0 0.0
    %569 = vmatpush1.xpose.msra.mxu0 0.0
    %570 = vmatprep.subr.mxu0 0.0
    %571 = vmatpush1.xpose.msra.mxu0 0.0
    %572 = vmatprep.subr.mxu0 0.0
    %573 = vmatpush1.xpose.msra.mxu0 0.0
    %574 = vmatprep.subr.mxu0 0.0
    %575 = vmatpush1.xpose.msra.mxu0 0.0
    %576 = vmatprep.subr.mxu0 0.0
    %577 = vmatpush1.xpose.msra.mxu0 0.0
    %578 = vmatprep.subr.mxu0 0.0
    %579 = vmatpush1.xpose.msra.mxu0 0.0
    %580 = vmatprep.subr.mxu0 0.0
    %581 = vmatpush1.xpose.msra.mxu0 0.0
    %582 = vmatprep.subr.mxu0 0.0
    %583 = vmatpush1.xpose.msra.mxu0 0.0
    %584 = vmatprep.subr.mxu0 0.0
    %585 = vmatpush1.xpose.msra.mxu0 0.0
    %586 = vmatprep.subr.mxu0 0.0
    %587 = vmatpush1.xpose.msra.mxu0 0.0
    %588 = vmatprep.subr.mxu0 0.0
    %589 = vmatpush1.xpose.msra.mxu0 0.0
    %590 = vmatprep.subr.mxu0 0.0
    %591 = vmatpush1.xpose.msra.mxu0 0.0
    %592 = vmatprep.subr.mxu0 0.0
    %593 = vmatpush1.xpose.msra.mxu0 0.0
    %594 = vmatprep.mubr.f32.mxu0 0.0
    %595 = vmatmul.mubr.f32.gmra.mrb[0].mxu0 %v519
    %v596 = vpop.f32.mrb[0].mxu0
    %v597 = vadd.f32 %v529, %v596
    %v598 = vpop.f32.mrb[0].mxu0
    %599 = vdwg.mxu0
    %600 = vst [vmem:[#allocation8] sm:$0x1] %v597
    // Predicated region
    $region38: #{tpu_custom_call.1} parent=1 // pred_check
      _
    $region39: #{tpu_custom_call.1} parent=1 // pred_check_branch
      %602 = sbr.rel (0) target = $region41
    $region40: #{tpu_custom_call.1} parent=1 // pred_region
      %s604 = ssub.s32 16, 16
      %605 = vsyncadd [#allocation5], %s604
      %s607 = sshll.u32 [#allocation8], 4
      %s608 = int_to_ptr.vmem [resolvable:$true] %s607
      %610 = dma.vmem_to_hbm [thread:$0]  %s608, 16, %s7, [#allocation5]
    $region41: #{tpu_custom_call.1} parent=1 // pred_fallthru
      _
    // Predicated region
    $region42: #{tpu_custom_call.1} parent=1 // pred_check
      _
    $region43: #{tpu_custom_call.1} parent=1 // pred_check_branch
      %612 = sbr.rel (0) target = $region45
    $region44: #{tpu_custom_call.1} parent=1 // pred_region
      %613 = dma.done [#allocation5], 16
    $region45: #{tpu_custom_call.1} parent=1 // pred_fallthru
      _
    %614 = vsyncpa [#allocation4], 1
    %615 = vsyncpa [#allocation7], 1
    %616 = vsyncpa [#allocation5], 1

</llo_original>
